<compile_context>
chip_gen: v7x
topology: tpu7x:2x2x1
jax: 0.10.0
libtpu: 0.0.40
codegen_flags: <defaults>
</compile_context>

<pallas_src>
import functools

import numpy as np
import jax
import jax.numpy as jnp
from jax import lax
from jax.experimental import pallas as pl
from jax.experimental.pallas import tpu as pltpu

BN_EPS = 1e-5        # nn.SyncBatchNorm default eps
NORM_EPS = 1e-12     # F.normalize default eps
NEG_INF = -1e30      # mask value for padded anchor columns

# HBM storage dtype for activations / weights fed to the MXU. The kernels feed
# this dtype straight to jnp.dot (no upcast), so flipping to jnp.bfloat16 on
# v6e/v7x halves HBM traffic + VMEM tiles and runs the MXU at native bf16 rate;
# all post-matmul VPU math stays f32 (safe on v5e).
ACT_DTYPE = jnp.float32


def _device_config():
    """Per-generation scoped-VMEM budget and production row-tile target.

    Tile sizing is lane-padding aware: a (TILE, C<128) f32 block occupies
    TILE*128*4 B in VMEM regardless of C, and proj_kd additionally holds a few
    (TILE, 128) f32 softmax temporaries, so the working set is ~O(TILE * 3 KiB).
    """
    try:
        kind = jax.devices()[0].device_kind.lower()
    except Exception:  # pragma: no cover - defensive
        kind = ""
    if "v7" in kind:                       # 64 MiB physical VMEM, 2 TCs
        return 48 * 1024 * 1024, 1536
    if "v6" in kind or "v5" in kind:       # 128 MiB physical VMEM
        return 96 * 1024 * 1024, 3072
    return 32 * 1024 * 1024, 1024          # unknown generation: conservative


def _row_tile(n, target, multiple):
    """Largest multiple-of-`multiple` row tile that divides n and is <= target."""
    assert n % multiple == 0, "row count must be a multiple of the packing tile"
    t = max(multiple, min(target, n) - (min(target, n) % multiple))
    while n % t:
        t -= multiple
    return t


# ----------------------------- Pallas kernels ------------------------------

def stats_l2norm_kernel(s_ref, t4_ref, seg_ref, tn_ref, colsum_ref, gram_ref):
    """Fused streaming pass over row tiles.

    * Student BN statistics as colsum(x) and Gram(x) = x^T x (no x@W1 here --
      mean/var of h = x@W1 are recovered in the wrapper), so this side is a
      pure HBM-read at the bandwidth roofline.
    * Teacher per-pixel L2 normalization on a 128-lane packed view
      (pack pixels per row); the per-pixel sum-of-squares is a segmented
      reduction done as one matmul against a block-diagonal ones matrix on the
      otherwise-idle MXU, keeping both the load and the store lane-dense.
    """
    i = pl.program_id(0)

    @pl.when(i == 0)
    def _init():
        colsum_ref[...] = jnp.zeros_like(colsum_ref)
        gram_ref[...] = jnp.zeros_like(gram_ref)

    x = s_ref[...]                                       # (TILE, Cs), native dtype
    colsum_ref[...] += jnp.sum(x.astype(jnp.float32), axis=0, keepdims=True)
    gram_ref[...] += lax.dot_general(                    # x^T @ x (contract rows)
        x, x, (((0,), (0,)), ((), ())), preferred_element_type=jnp.float32)

    t4 = t4_ref[...].astype(jnp.float32)                 # (TILE//pack, 128)
    ssq = jnp.dot(t4 * t4, seg_ref[...], preferred_element_type=jnp.float32)
    inv = lax.rsqrt(jnp.maximum(ssq, NORM_EPS * NORM_EPS))   # == 1/max(||x||,eps)
    tn_ref[...] = (t4 * inv).astype(tn_ref.dtype)        # full 128-lane store


def proj_kd_kernel(s_ref, t_ref, m_ref, w1_ref, scale_ref, shift_ref,
                   w2_ref, xc_ref, o_ref, *, k_valid):
    """Fused pass 2: project head (folded BN affine) -> L2 norm -> contrast
    logits -> masked softmax-KL row sums accumulated into a (1,1) output.

    The batchmean divide, T_kd^2 scaling and valid-pixel count are applied
    outside the kernel.
    """
    i = pl.program_id(0)

    @pl.when(i == 0)
    def _init():
        o_ref[...] = jnp.zeros_like(o_ref)

    # ---- project head: conv1x1 -> BN(precomputed stats) -> ReLU -> conv1x1
    h = jnp.dot(s_ref[...], w1_ref[...], preferred_element_type=jnp.float32)
    h = jnp.maximum(h * scale_ref[...] + shift_ref[...], 0.0)
    y = jnp.dot(h, w2_ref[...], preferred_element_type=jnp.float32)
    s_n = y * lax.rsqrt(jnp.maximum(jnp.sum(y * y, axis=1, keepdims=True),
                                    NORM_EPS * NORM_EPS))          # F.normalize

    # ---- contrast logits; anchors pre-transposed to (Ct, KP) and pre-scaled
    # by 1/(tau*T_kd); the two dots are adjacent so the resident RHS is reused.
    s_log = jnp.dot(s_n, xc_ref[...], preferred_element_type=jnp.float32)
    t_log = jnp.dot(t_ref[...], xc_ref[...], preferred_element_type=jnp.float32)

    kp = s_log.shape[1]
    col_valid = lax.broadcasted_iota(jnp.int32, (1, kp), 1) < k_valid
    s_log = jnp.where(col_valid, s_log, NEG_INF)
    t_log = jnp.where(col_valid, t_log, NEG_INF)

    s_sh = s_log - jnp.max(s_log, axis=1, keepdims=True)
    t_sh = t_log - jnp.max(t_log, axis=1, keepdims=True)
    log_z_s = jnp.log(jnp.sum(jnp.exp(s_sh), axis=1, keepdims=True))
    t_exp = jnp.exp(t_sh)
    z_t = jnp.sum(t_exp, axis=1, keepdims=True)
    # Algebraic KL row sum (p_t / log_p_t / kl never materialized):
    #   sum_k p_t*(log p_t - log p_s) = sum_k t_exp*(t_sh-s_sh)/z_t
    #                                   + log z_s - log z_t
    num = jnp.sum(jnp.where(col_valid, t_exp * (t_sh - s_sh), 0.0),
                  axis=1, keepdims=True)
    row_kl = num / z_t + log_z_s - jnp.log(z_t)                    # (TILE, 1)

    m = m_ref[...].astype(jnp.float32)   # compact validity mask (replaces gather)
    o_ref[...] += jnp.sum(row_kl * m, axis=0, keepdims=True)


# ------------------------------ wrappers ------------------------------------

def stats_l2norm_pallas(s, t_packed, seg_ones, row_tile, pack, vmem_limit):
    n, cs = s.shape
    rp, lanes = t_packed.shape
    ct = lanes // pack
    assert n % row_tile == 0 and row_tile % (8 * pack) == 0
    rpt = row_tile // pack
    itm = jnp.dtype(s.dtype).itemsize
    cost = pl.CostEstimate(
        flops=2 * n * cs * cs + n * cs + 3 * n * ct + 2 * rp * lanes * lanes,
        transcendentals=n * ct,
        bytes_accessed=itm * (n * cs + 2 * n * ct)
                       + 4 * (lanes * lanes + cs + cs * cs))
    # TODO(synk): if profiling shows exposed DMA here, add
    # pipeline_mode=pl.Buffered(3) on the two row-tile input specs.
    return pl.pallas_call(
        stats_l2norm_kernel,
        out_shape=(jax.ShapeDtypeStruct((rp, lanes), t_packed.dtype),   # t_norm
                   jax.ShapeDtypeStruct((1, cs), jnp.float32),          # colsum
                   jax.ShapeDtypeStruct((cs, cs), jnp.float32)),        # Gram
        grid=(n // row_tile,),
        in_specs=[
            pl.BlockSpec((row_tile, cs), lambda i: (i, 0)),     # student (tiled)
            pl.BlockSpec((rpt, lanes), lambda i: (i, 0)),       # teacher (packed)
            pl.BlockSpec((lanes, lanes), lambda i: (0, 0)),     # seg-ones (resident)
        ],
        out_specs=(
            pl.BlockSpec((rpt, lanes), lambda i: (i, 0)),       # t_norm (tiled)
            pl.BlockSpec((1, cs), lambda i: (0, 0)),            # accumulator
            pl.BlockSpec((cs, cs), lambda i: (0, 0)),           # accumulator
        ),
        compiler_params=pltpu.CompilerParams(
            dimension_semantics=("arbitrary",),
            vmem_limit_bytes=vmem_limit),
        cost_estimate=cost,
    )(s, t_packed, seg_ones)


def proj_kd_loss_pallas(s_flat, t_norm, mask, w1, bn_scale, bn_shift, w2,
                        xc_t_scaled, *, k_valid, row_tile, vmem_limit):
    n, cs = s_flat.shape
    ct = w1.shape[1]
    kp = xc_t_scaled.shape[1]
    assert n % row_tile == 0
    kern = functools.partial(proj_kd_kernel, k_valid=int(k_valid))
    itm = jnp.dtype(s_flat.dtype).itemsize
    cost = pl.CostEstimate(
        flops=n * (2 * cs * ct + 2 * ct * ct + 4 * ct * kp + 12 * kp + 8 * ct),
        transcendentals=n * (2 * kp + 4),
        bytes_accessed=itm * n * (cs + ct) + 2 * n
                       + 4 * (cs * ct + ct * ct + 2 * ct + ct * kp + 1))
    # TODO(synk): on v7x split the row grid across the 2 TensorCores
    # (pltpu.CORE_PARALLEL leading axis + per-core partial accumulators).
    return pl.pallas_call(
        kern,
        out_shape=jax.ShapeDtypeStruct((1, 1), jnp.float32),
        grid=(n // row_tile,),
        in_specs=[
            pl.BlockSpec((row_tile, cs), lambda i: (i, 0)),   # student feats (tiled)
            pl.BlockSpec((row_tile, ct), lambda i: (i, 0)),   # teacher feats (tiled)
            pl.BlockSpec((row_tile, 1), lambda i: (i, 0)),    # bf16 validity mask
            pl.BlockSpec((cs, ct), lambda i: (0, 0)),         # W1 (resident)
            pl.BlockSpec((1, ct), lambda i: (0, 0)),          # BN scale
            pl.BlockSpec((1, ct), lambda i: (0, 0)),          # BN shift
            pl.BlockSpec((ct, ct), lambda i: (0, 0)),         # W2
            pl.BlockSpec((ct, kp), lambda i: (0, 0)),         # anchors^T (resident)
        ],
        out_specs=pl.BlockSpec((1, 1), lambda i: (0, 0)),     # scalar accumulator
        compiler_params=pltpu.CompilerParams(
            dimension_semantics=("arbitrary",),
            vmem_limit_bytes=vmem_limit),
        cost_estimate=cost,
    )(s_flat, t_norm, mask, w1, bn_scale, bn_shift, w2, xc_t_scaled)


# --------------------------- host-side glue ---------------------------------
# TODO(synk): torch.distributed.all_gather has no Pallas equivalent here; we
# assume world_size == 1 so concat_all_gather is the identity.
# TODO(synk): the stateful memory-bank dequeue/enqueue is a dynamic per-class
# scatter (no-grad buffer bookkeeping in the original); kept as host numpy.

def dequeue_and_enqueue(queue, ptr, keys_nchw, labels_bhw, ignore_label,
                        region_memory_size):
    queue = queue.copy()
    ptr = ptr.copy()
    bsz, c, _, _ = keys_nchw.shape
    for bs in range(bsz):
        this_feat = keys_nchw[bs].reshape(c, -1)
        this_label = labels_bhw[bs].reshape(-1)
        ids = [int(x) for x in np.unique(this_label) if int(x) != ignore_label]
        for lb in ids:
            idxs = np.nonzero(this_label == lb)[0]
            feat = this_feat[:, idxs].mean(axis=1)
            p = int(ptr[lb])
            queue[lb, p, :] = feat / max(float(np.linalg.norm(feat)), NORM_EPS)
            ptr[lb] = (ptr[lb] + 1) % region_memory_size
    return queue, ptr


def sample_negative(queue, region_index):
    c, _, d = queue.shape
    return queue[:, region_index, :].reshape(c * len(region_index), d)


def reference_forward(s_flat, t_flat, w1, gamma, beta, w2, labels_np,
                      queue_init, region_index, region_memory_size,
                      num_classes, ignore_label, tau, tkd, B, H, W, t_channels):
    """Pure numpy (float64) reference of the forward pass."""
    s = np.asarray(s_flat, np.float64)
    t = np.asarray(t_flat, np.float64)
    w1 = np.asarray(w1, np.float64); w2 = np.asarray(w2, np.float64)
    gamma = np.asarray(gamma, np.float64); beta = np.asarray(beta, np.float64)
    queue = np.asarray(queue_init, np.float64)

    h = s @ w1
    mean = h.mean(axis=0, keepdims=True)
    var = ((h - mean) ** 2).mean(axis=0, keepdims=True)
    hn = (h - mean) / np.sqrt(var + BN_EPS) * gamma + beta
    y = np.maximum(hn, 0.0) @ w2
    s_norm = y / np.maximum(np.linalg.norm(y, axis=1, keepdims=True), NORM_EPS)
    t_norm = t / np.maximum(np.linalg.norm(t, axis=1, keepdims=True), NORM_EPS)

    labels_flat = labels_np.reshape(-1)
    mask = labels_flat != ignore_label
    s_sel = s_norm[mask]; t_sel = t_norm[mask]

    t_nchw = t_norm.reshape(B, H, W, t_channels).transpose(0, 3, 1, 2)
    ptr = np.zeros((num_classes,), np.int64)
    queue, ptr = dequeue_and_enqueue(queue, ptr, t_nchw, labels_np,
                                     ignore_label, region_memory_size)
    xc = sample_negative(queue, region_index)

    s_logits = s_sel @ xc.T / tau / tkd
    t_logits = t_sel @ xc.T / tau / tkd
    log_p_s = s_logits - s_logits.max(axis=1, keepdims=True)
    log_p_s = log_p_s - np.log(np.exp(log_p_s).sum(axis=1, keepdims=True))
    t_sh = t_logits - t_logits.max(axis=1, keepdims=True)
    t_exp = np.exp(t_sh); z = t_exp.sum(axis=1, keepdims=True)
    p_t = t_exp / z; log_p_t = t_sh - np.log(z)
    kl = p_t * (log_p_t - log_p_s)
    return float(kl.sum() / s_sel.shape[0] * tkd ** 2)


# ------------------------------- driver --------------------------------------

if __name__ == "__main__":
    # hyperparameters (from the module __init__)
    num_classes = 4
    pixel_memory_size = 64          # unused in forward
    region_memory_size = 8
    region_contrast_size = 4
    pixel_contrast_size = 8         # unused in forward
    contrast_kd_temperature = 1.0
    contrast_temperature = 0.1
    s_channels = 16
    t_channels = 32
    ignore_label = 255
    B, H, W = 2, 16, 16
    N = B * H * W

    key = jax.random.PRNGKey(0)
    ks = jax.random.split(key, 8)

    # inputs (PyTorch NCHW convention)
    s_feats = jax.random.normal(ks[0], (B, s_channels, H, W), jnp.float32)
    t_feats = jax.random.normal(ks[1], (B, t_channels, H, W), jnp.float32)
    labels = jax.random.randint(ks[2], (B, H, W), 0, num_classes)
    labels = labels.at[:, :4, :].set(ignore_label)              # some ignored pixels
    predict = jax.random.randint(ks[3], (B, H, W), 0, num_classes)  # reshaped, unused

    # deterministic parameter init
    w1 = 0.1 * jax.random.normal(ks[4], (s_channels, t_channels), jnp.float32)
    w2 = 0.1 * jax.random.normal(ks[5], (t_channels, t_channels), jnp.float32)
    gamma = jnp.ones((1, t_channels), jnp.float32)   # BN weight
    beta = jnp.zeros((1, t_channels), jnp.float32)   # BN bias

    # teacher_segment_queue buffer: randn, L2-normalized along dim=2
    q0 = jax.random.normal(ks[6], (num_classes, region_memory_size, t_channels),
                           jnp.float32)
    q0 = q0 / jnp.maximum(jnp.linalg.norm(q0, axis=2, keepdims=True), NORM_EPS)

    # flatten NCHW -> (B*H*W, C) in (b, h, w) row order (permute(0,2,3,1).view)
    s_flat = jnp.transpose(s_feats, (0, 2, 3, 1)).reshape(-1, s_channels)
    t_flat = jnp.transpose(t_feats, (0, 2, 3, 1)).reshape(-1, t_channels)
    s_act = s_flat.astype(ACT_DTYPE)
    t_act = t_flat.astype(ACT_DTYPE)

    # lane-dense packed view of the teacher buffer: (N, 32) -> (N/4, 128)
    assert 128 % t_channels == 0
    pack = 128 // t_channels
    assert N % (8 * pack) == 0
    t_packed = t_act.reshape(N // pack, pack * t_channels)

    vmem_limit, prod_tile_target = _device_config()
    # Small tile to exercise multi-step grids at test shapes; production uses
    # prod_tile_target rows (lane-padding-aware sizing; see _device_config).
    row_tile = _row_tile(N, target=128, multiple=8 * pack)

    # block-diagonal ones matrix for the in-kernel segmented sum-of-squares
    lane_grp = np.arange(pack * t_channels) // t_channels
    seg_ones = jnp.asarray((lane_grp[:, None] == lane_grp[None, :])
                           .astype(np.float32))

    # ---- Pallas fused pass 1: BN statistics (colsum + Gram) + teacher l2norm
    t_norm_packed, colsum, gram = stats_l2norm_pallas(
        s_act, t_packed, seg_ones, row_tile, pack, vmem_limit)

    # fold BN statistics into an affine (scale, shift) outside the kernel
    w1f = w1.astype(jnp.float32)
    mean = (colsum @ w1f) / N                                   # (1, Ct)
    eh2 = jnp.sum(w1f * (gram @ w1f), axis=0, keepdims=True) / N
    var = jnp.maximum(eh2 - mean * mean, 0.0)
    # TODO(synk): at production pixel counts switch the stats pass to per-tile
    # Welford/Chan combine; E[h^2]-E[h]^2 in f32 can cancel catastrophically.
    inv_std = lax.rsqrt(var + BN_EPS)
    bn_scale = gamma * inv_std                    # folded BN affine (1, Ct)
    bn_shift = beta - mean * bn_scale

    t_norm = jax.block_until_ready(t_norm_packed).reshape(N, t_channels)

    # ---- host: memory-bank update with the normalized teacher features ----
    labels_np = np.asarray(labels)
    assert labels_np.shape[-1] == W
    t_norm_np = np.asarray(t_norm).astype(np.float32)
    t_norm_nchw = t_norm_np.reshape(B, H, W, t_channels).transpose(0, 3, 1, 2)
    queue_np, ptr_np = dequeue_and_enqueue(
        np.asarray(q0).copy(), np.zeros((num_classes,), np.int64),
        t_norm_nchw, labels_np, ignore_label, region_memory_size)

    # torch.randperm -> deterministic jax permutation (host glue)
    region_index = np.asarray(
        jax.random.permutation(ks[7], region_memory_size))[:region_contrast_size]
    x_contrast = sample_negative(queue_np, region_index).astype(np.float32)

    # anchors: fold 1/(tau*T_kd), pre-transpose to (Ct, KP), zero-pad K to 128
    K = x_contrast.shape[0]
    KP = ((K + 127) // 128) * 128
    xc_t = np.zeros((t_channels, KP), np.float32)
    xc_t[:, :K] = (x_contrast / (contrast_temperature
                                 * contrast_kd_temperature)).T

    # compact 0/1 validity mask (replaces the host boolean gather + the int32
    # labels column); valid count computed outside the kernel.
    valid = labels_np.reshape(-1) != ignore_label
    n_valid = float(valid.sum())
    mask_dev = jnp.asarray(valid.reshape(-1, 1).astype(np.float32),
                           dtype=jnp.bfloat16)

    # ---- Pallas fused pass 2: project head + contrast logits + masked KL sum
    loss_sum = proj_kd_loss_pallas(
        s_act, t_norm, mask_dev, w1.astype(ACT_DTYPE), bn_scale, bn_shift,
        w2.astype(ACT_DTYPE), jnp.asarray(xc_t).astype(ACT_DTYPE),
        k_valid=K, row_tile=row_tile, vmem_limit=vmem_limit)
    loss_sum = jax.block_until_ready(loss_sum)

    # 'batchmean' divide and T_kd^2 scaling outside the kernel.
    # (Original returns 0*(empty mean) when no valid pixels; we return 0.0.)
    if n_valid > 0:
        loss_val = (float(np.asarray(loss_sum)[0, 0]) / n_valid
                    * contrast_kd_temperature ** 2)
    else:
        loss_val = 0.0

    # numpy float64 reference check (tolerance loosened if bf16 storage is used)
    ref_val = reference_forward(
        np.asarray(s_flat), np.asarray(t_flat), np.asarray(w1), np.asarray(gamma),
        np.asarray(beta), np.asarray(w2), labels_np, np.asarray(q0),
        region_index, region_memory_size, num_classes, ignore_label,
        contrast_temperature, contrast_kd_temperature, B, H, W, t_channels)

    rtol = 5e-3 if ACT_DTYPE == jnp.float32 else 3e-2
    np.testing.assert_allclose(loss_val, ref_val, rtol=rtol, atol=1e-4)
    print("KERNEL_OK")
</pallas_src>

<mosaic_0001>
module attributes {stable_mosaic.version = 11 : i64} {
  func.func @stats_l2norm_kernel(%arg0: i32, %arg1: memref<128x16xf32, #tpu.memory_space<vmem>>, %arg2: memref<32x128xf32, #tpu.memory_space<vmem>>, %arg3: memref<128x128xf32, #tpu.memory_space<vmem>>, %arg4: memref<32x128xf32, #tpu.memory_space<vmem>>, %arg5: memref<1x16xf32, #tpu.memory_space<vmem>>, %arg6: memref<16x16xf32, #tpu.memory_space<vmem>>) attributes {dimension_semantics = [#tpu.dimension_semantics<arbitrary>], iteration_bounds = array<i64: 4>, scalar_prefetch = 0 : i64, scratch_operands = 0 : i64, tpu.core_type = #tpu.core_type<tc>, window_params = [{transform_indices = @transform_0, window_bounds = array<i64: 128, 16>}, {transform_indices = @transform_1, window_bounds = array<i64: 32, 128>}, {pipeline_mode = #tpu.pipeline_mode<synchronous>, transform_indices = @transform_2, window_bounds = array<i64: 128, 128>}, {transform_indices = @transform_3, window_bounds = array<i64: 32, 128>}, {pipeline_mode = #tpu.pipeline_mode<synchronous>, transform_indices = @transform_4, window_bounds = array<i64: 1, 16>}, {pipeline_mode = #tpu.pipeline_mode<synchronous>, transform_indices = @transform_5, window_bounds = array<i64: 16, 16>}]} {
    %c0_i32 = arith.constant 0 : i32
    %0 = arith.cmpi eq, %arg0, %c0_i32 : i32
    %1 = arith.extui %0 : i1 to i32
    %c0_i32_0 = arith.constant 0 : i32
    %2 = arith.cmpi ne, %1, %c0_i32_0 : i32
    scf.if %2 {
      %cst_19 = arith.constant 0.000000e+00 : f32
      %22 = vector.broadcast %cst_19 : f32 to vector<1x16xf32>
      %c0_20 = arith.constant 0 : index
      %c0_21 = arith.constant 0 : index
      %23 = vector.load %arg5[%c0_20, %c0_21] : memref<1x16xf32, #tpu.memory_space<vmem>>, vector<1x16xf32>
      tpu.vector_store %arg5[%c0_20, %c0_21], %22 {strides = array<i32>} : memref<1x16xf32, #tpu.memory_space<vmem>>, vector<1x16xf32>,
      %cst_22 = arith.constant 0.000000e+00 : f32
      %24 = vector.broadcast %cst_22 : f32 to vector<16x16xf32>
      %c0_23 = arith.constant 0 : index
      %c0_24 = arith.constant 0 : index
      %25 = vector.load %arg6[%c0_23, %c0_24] : memref<16x16xf32, #tpu.memory_space<vmem>>, vector<16x16xf32>
      tpu.vector_store %arg6[%c0_23, %c0_24], %24 {strides = array<i32>} : memref<16x16xf32, #tpu.memory_space<vmem>>, vector<16x16xf32>,
    } else {
    }
    %c0 = arith.constant 0 : index
    %c0_1 = arith.constant 0 : index
    %3 = vector.load %arg1[%c0, %c0_1] : memref<128x16xf32, #tpu.memory_space<vmem>>, vector<128x16xf32>
    %c0_2 = arith.constant 0 : index
    %c0_3 = arith.constant 0 : index
    %4 = vector.load %arg5[%c0_2, %c0_3] : memref<1x16xf32, #tpu.memory_space<vmem>>, vector<1x16xf32>
    %cst = arith.constant dense<0.000000e+00> : vector<16xf32>
    %5 = vector.multi_reduction <add>, %3, %cst [0] : vector<128x16xf32> to vector<16xf32>
    %6 = vector.shape_cast %5 : vector<16xf32> to vector<1x16xf32>
    %7 = arith.addf %4, %6 : vector<1x16xf32>
    %c0_4 = arith.constant 0 : index
    %c0_5 = arith.constant 0 : index
    %8 = vector.load %arg5[%c0_4, %c0_5] : memref<1x16xf32, #tpu.memory_space<vmem>>, vector<1x16xf32>
    tpu.vector_store %arg5[%c0_4, %c0_5], %7 {strides = array<i32>} : memref<1x16xf32, #tpu.memory_space<vmem>>, vector<1x16xf32>,
    %c0_6 = arith.constant 0 : index
    %c0_7 = arith.constant 0 : index
    %9 = vector.load %arg6[%c0_6, %c0_7] : memref<16x16xf32, #tpu.memory_space<vmem>>, vector<16x16xf32>
    %cst_8 = arith.constant dense<0.000000e+00> : vector<16x16xf32>
    %10 = tpu.matmul %3, %3, %cst_8 {dimension_numbers = #tpu.dot_dimension_numbers<[0], [0], [1], [1], [0, 1, 1, 1], [], []>} : vector<128x16xf32>, vector<128x16xf32>, vector<16x16xf32> -> vector<16x16xf32>
    %11 = arith.addf %9, %10 : vector<16x16xf32>
    %c0_9 = arith.constant 0 : index
    %c0_10 = arith.constant 0 : index
    %12 = vector.load %arg6[%c0_9, %c0_10] : memref<16x16xf32, #tpu.memory_space<vmem>>, vector<16x16xf32>
    tpu.vector_store %arg6[%c0_9, %c0_10], %11 {strides = array<i32>} : memref<16x16xf32, #tpu.memory_space<vmem>>, vector<16x16xf32>,
    %c0_11 = arith.constant 0 : index
    %c0_12 = arith.constant 0 : index
    %13 = vector.load %arg2[%c0_11, %c0_12] : memref<32x128xf32, #tpu.memory_space<vmem>>, vector<32x128xf32>
    %14 = arith.mulf %13, %13 : vector<32x128xf32>
    %c0_13 = arith.constant 0 : index
    %c0_14 = arith.constant 0 : index
    %15 = vector.load %arg3[%c0_13, %c0_14] : memref<128x128xf32, #tpu.memory_space<vmem>>, vector<128x128xf32>
    %cst_15 = arith.constant dense<0.000000e+00> : vector<32x128xf32>
    %16 = tpu.matmul %14, %15, %cst_15 {dimension_numbers = #tpu.dot_dimension_numbers<[1], [0], [0], [1], [0, 0, 1, 1], [], []>} : vector<32x128xf32>, vector<128x128xf32>, vector<32x128xf32> -> vector<32x128xf32>
    %cst_16 = arith.constant 1.000000e-24 : f32
    %17 = vector.broadcast %cst_16 : f32 to vector<32x128xf32>
    %18 = arith.maximumf %16, %17 : vector<32x128xf32>
    %19 = math.rsqrt %18 : vector<32x128xf32>
    %20 = arith.mulf %13, %19 : vector<32x128xf32>
    %c0_17 = arith.constant 0 : index
    %c0_18 = arith.constant 0 : index
    %21 = vector.load %arg4[%c0_17, %c0_18] : memref<32x128xf32, #tpu.memory_space<vmem>>, vector<32x128xf32>
    tpu.vector_store %arg4[%c0_17, %c0_18], %20 {strides = array<i32>} : memref<32x128xf32, #tpu.memory_space<vmem>>, vector<32x128xf32>,
    return
  }
  func.func @transform_0(%arg0: i32) -> (i32, i32) {
    %c0_i32 = arith.constant 0 : i32
    %c0_i32_0 = arith.constant 0 : i32
    return %arg0, %c0_i32 : i32, i32
  }
  func.func @transform_1(%arg0: i32) -> (i32, i32) {
    %c0_i32 = arith.constant 0 : i32
    %c0_i32_0 = arith.constant 0 : i32
    return %arg0, %c0_i32 : i32, i32
  }
  func.func @transform_2(%arg0: i32) -> (i32, i32) {
    %c0_i32 = arith.constant 0 : i32
    %c0_i32_0 = arith.constant 0 : i32
    %c0_i32_1 = arith.constant 0 : i32
    return %c0_i32, %c0_i32_0 : i32, i32
  }
  func.func @transform_3(%arg0: i32) -> (i32, i32) {
    %c0_i32 = arith.constant 0 : i32
    %c0_i32_0 = arith.constant 0 : i32
    return %arg0, %c0_i32 : i32, i32
  }
  func.func @transform_4(%arg0: i32) -> (i32, i32) {
    %c0_i32 = arith.constant 0 : i32
    %c0_i32_0 = arith.constant 0 : i32
    %c0_i32_1 = arith.constant 0 : i32
    return %c0_i32, %c0_i32_0 : i32, i32
  }
  func.func @transform_5(%arg0: i32) -> (i32, i32) {
    %c0_i32 = arith.constant 0 : i32
    %c0_i32_0 = arith.constant 0 : i32
    %c0_i32_1 = arith.constant 0 : i32
    return %c0_i32, %c0_i32_0 : i32, i32
  }
}

</mosaic_0001>

<llo_original>
// kernel: tpu_custom_call.1
$region0: #{tpu_custom_call.1}
  #allocation0 [shape = 'u32[]', space=smem, size = 0x4, offset = 0x4, fixed_abs, tag = 'smem constant byte address 0x4 - core index']
  #allocation1 [shape = 'u32[144,128]{1,0:T(1,128)}', space=vmem, size = 0x12000, scoped, tag = 'internal scratch']
  %s0 = inlined_call_operand.vmem [shape: f32[512,16], index: 0, kind: input, shape index: {}]
  %s1 = inlined_call_operand.vmem [shape: f32[128,128], index: 1, kind: input, shape index: {}]
  %s2 = inlined_call_operand.vmem [shape: f32[128,128], index: 2, kind: input, shape index: {}]
  %s3 = inlined_call_operand.hbm [shape: f32[128,128], index: 3, kind: output, shape index: {0}]
  %s4 = inlined_call_operand.hbm [shape: f32[1,16], index: 4, kind: output, shape index: {1}]
  %s5 = inlined_call_operand.hbm [shape: f32[16,16], index: 5, kind: output, shape index: {2}]
  %6 = xla_tuple %s3, %s4, %s5
  %s7 = sld [smem:[#allocation0]]
  $region65: #{tpu_custom_call.1} parent=0
    _
  %s9 = ssub.s32 1, %s7
  %s10 = scalar_select 0, %s9, %s7
  $region1: #{tpu_custom_call.1} parent=0
    #allocation2 [shape = 'u8[32768]{0}', space=vmem, size = 0x8000, scoped, tag = 'output window, operand 0']
    #allocation3 [shape = 's32[2]{0}', space=sflag, size = 0x8, scoped, tag = 'scoped memory for tpu_custom_call.1']
    #allocation4 [shape = 'u8[512]{0}', space=vmem, size = 0x400, scoped, tag = 'output window, operand 1, single buffered']
    #allocation5 [shape = 's32[1]{0}', space=sflag, size = 0x4, scoped, tag = 'scoped memory for tpu_custom_call.1']
    #allocation6 [shape = 'u8[8192]{0}', space=vmem, size = 0x2000, scoped, tag = 'output window, operand 2, single buffered']
    %11 = vsyncpa [#allocation3], 0
    %s12 = scalar_lea.sflag [#allocation3], 1
    %13 = vsyncpa %s12, 0
    %14 = vsyncpa [#allocation5], 0
    loop: start=0, step=1, limit=6
    $region2: #{tpu_custom_call.1} parent=1 // loop_pre_header
      _
    $region3: #{tpu_custom_call.1} parent=1 // loop_header
      %s16 = sphi 0, %s20
      %p17 = scmp.ge.s32.totalorder %s16, 6
      %s26 = sphi 0, %s28
      %s29 = sphi 0, %s26
      %s30 = sphi 0, %s29
      %s46 = sphi 0, %s30
      %s52 = sphi 0, %s54
      %s55 = sphi 0, %s52
      %s56 = sphi 0, %s55
      %s72 = sphi 0, %s56
      %s76 = sphi 0, %s76
      %s78 = sphi 0, %s76
      %s79 = sphi 0, %s78
      %s93 = sphi 0, %s79
      %s99 = sphi 0, %s101
      %s102 = sphi 0, %s99
      %s103 = sphi 0, %s102
      %s119 = sphi 0, %s103
      %s123 = sphi 0, %s123
      %s125 = sphi 0, %s123
      %s126 = sphi 0, %s125
      %s140 = sphi 0, %s126
      %s144 = sphi 0, %s144
      %s146 = sphi 0, %s144
      %s147 = sphi 0, %s146
      %s161 = sphi 0, %s147
    $region4: #{tpu_custom_call.1} parent=1 // loop_header_branch
      %19 = sbr.rel (%p17) target = $region8
    $region5: #{tpu_custom_call.1} parent=1 // loop_body
      %s21 = ssub.s32 %s16, 1
      %s22 = ssub.s32 %s16, 2
      %s23 = sadd.s32 %s16, 1
      %s24 = ssub.s32 %s16, %s23
      %p25 = scmp.eq.s32.totalorder %s24, 0
      %s27 = sadd.s32 %s26, 1
      %s28 = scalar_select %p25, %s26, %s27
      %p31 = pneg %p25
      %p32 = scmp.eq.s32.totalorder %s16, 3
      %p33 = por %p31, %p32
      %p34 = scmp.ne.s32.totalorder %s26, %s29
      %p35 = scmp.eq.s32.totalorder %s16, 0
      %p36 = por %p34, %p35
      %p37 = scmp.ne.s32.totalorder %s26, %s29
      %p38 = scmp.eq.s32.totalorder %s21, 3
      %p39 = por %p37, %p38
      %p40 = scmp.ne.s32.totalorder %s29, %s30
      %p41 = scmp.eq.s32.totalorder %s21, 0
      %p42 = por %p40, %p41
      %p43 = scmp.ne.s32.totalorder %s29, %s30
      %p44 = scmp.eq.s32.totalorder %s22, 3
      %p45 = por %p43, %p44
      %p47 = scmp.ne.s32.totalorder %s30, %s46
      %p48 = scmp.eq.s32.totalorder %s22, 0
      %p49 = por %p47, %p48
      %s50 = ssub.s32 %s16, %s23
      %p51 = scmp.eq.s32.totalorder %s50, 0
      %s53 = sadd.s32 %s52, 1
      %s54 = scalar_select %p51, %s52, %s53
      %p57 = pneg %p51
      %p58 = scmp.eq.s32.totalorder %s16, 3
      %p59 = por %p57, %p58
      %p60 = scmp.ne.s32.totalorder %s52, %s55
      %p61 = scmp.eq.s32.totalorder %s16, 0
      %p62 = por %p60, %p61
      %p63 = scmp.ne.s32.totalorder %s52, %s55
      %p64 = scmp.eq.s32.totalorder %s21, 3
      %p65 = por %p63, %p64
      %p66 = scmp.ne.s32.totalorder %s55, %s56
      %p67 = scmp.eq.s32.totalorder %s21, 0
      %p68 = por %p66, %p67
      %p69 = scmp.ne.s32.totalorder %s55, %s56
      %p70 = scmp.eq.s32.totalorder %s22, 3
      %p71 = por %p69, %p70
      %p73 = scmp.ne.s32.totalorder %s56, %s72
      %p74 = scmp.eq.s32.totalorder %s22, 0
      %p75 = por %p73, %p74
      %s77 = sadd.s32 %s76, 1
      %p80 = scmp.eq.s32.totalorder %s16, 3
      %p81 = scmp.ne.s32.totalorder %s76, %s78
      %p82 = scmp.eq.s32.totalorder %s16, 0
      %p83 = por %p81, %p82
      %p84 = scmp.ne.s32.totalorder %s76, %s78
      %p85 = scmp.eq.s32.totalorder %s21, 3
      %p86 = por %p84, %p85
      %p87 = scmp.ne.s32.totalorder %s78, %s79
      %p88 = scmp.eq.s32.totalorder %s21, 0
      %p89 = por %p87, %p88
      %p90 = scmp.ne.s32.totalorder %s78, %s79
      %p91 = scmp.eq.s32.totalorder %s22, 3
      %p92 = por %p90, %p91
      %p94 = scmp.ne.s32.totalorder %s79, %s93
      %p95 = scmp.eq.s32.totalorder %s22, 0
      %p96 = por %p94, %p95
      %s97 = ssub.s32 %s16, %s23
      %p98 = scmp.eq.s32.totalorder %s97, 0
      %s100 = sadd.s32 %s99, 1
      %s101 = scalar_select %p98, %s99, %s100
      %p104 = pneg %p98
      %p105 = scmp.eq.s32.totalorder %s16, 3
      %p106 = por %p104, %p105
      %p107 = scmp.ne.s32.totalorder %s99, %s102
      %p108 = scmp.eq.s32.totalorder %s16, 0
      %p109 = por %p107, %p108
      %p110 = scmp.ne.s32.totalorder %s99, %s102
      %p111 = scmp.eq.s32.totalorder %s21, 3
      %p112 = por %p110, %p111
      %p113 = scmp.ne.s32.totalorder %s102, %s103
      %p114 = scmp.eq.s32.totalorder %s21, 0
      %p115 = por %p113, %p114
      %p116 = scmp.ne.s32.totalorder %s102, %s103
      %p117 = scmp.eq.s32.totalorder %s22, 3
      %p118 = por %p116, %p117
      %p120 = scmp.ne.s32.totalorder %s103, %s119
      %p121 = scmp.eq.s32.totalorder %s22, 0
      %p122 = por %p120, %p121
      %s124 = sadd.s32 %s123, 1
      %p127 = scmp.eq.s32.totalorder %s16, 3
      %p128 = scmp.ne.s32.totalorder %s123, %s125
      %p129 = scmp.eq.s32.totalorder %s16, 0
      %p130 = por %p128, %p129
      %p131 = scmp.ne.s32.totalorder %s123, %s125
      %p132 = scmp.eq.s32.totalorder %s21, 3
      %p133 = por %p131, %p132
      %p134 = scmp.ne.s32.totalorder %s125, %s126
      %p135 = scmp.eq.s32.totalorder %s21, 0
      %p136 = por %p134, %p135
      %p137 = scmp.ne.s32.totalorder %s125, %s126
      %p138 = scmp.eq.s32.totalorder %s22, 3
      %p139 = por %p137, %p138
      %p141 = scmp.ne.s32.totalorder %s126, %s140
      %p142 = scmp.eq.s32.totalorder %s22, 0
      %p143 = por %p141, %p142
      %s145 = sadd.s32 %s144, 1
      %p148 = scmp.eq.s32.totalorder %s16, 3
      %p149 = scmp.ne.s32.totalorder %s144, %s146
      %p150 = scmp.eq.s32.totalorder %s16, 0
      %p151 = por %p149, %p150
      %p152 = scmp.ne.s32.totalorder %s144, %s146
      %p153 = scmp.eq.s32.totalorder %s21, 3
      %p154 = por %p152, %p153
      %p155 = scmp.ne.s32.totalorder %s146, %s147
      %p156 = scmp.eq.s32.totalorder %s21, 0
      %p157 = por %p155, %p156
      %p158 = scmp.ne.s32.totalorder %s146, %s147
      %p159 = scmp.eq.s32.totalorder %s22, 3
      %p160 = por %p158, %p159
      %p162 = scmp.ne.s32.totalorder %s147, %s161
      %p163 = scmp.eq.s32.totalorder %s22, 0
      %p164 = por %p162, %p163
      %p165 = scmp.le.s32.totalorder 1, %s16
      %p166 = scmp.lt.s32.totalorder %s16, 5
      %p167 = pnand %p165, %p166
      %p168 = pneg %p167
      // Predicated region
      $region9: #{tpu_custom_call.1} parent=5 // pred_check
        _
      $region10: #{tpu_custom_call.1} parent=5 // pred_check_branch
        %170 = sbr.rel (%p167) target = $region12
      $region11: #{tpu_custom_call.1} parent=5 // pred_region
        %s171 = ssub.s32 %s16, 1
        // Predicated region
        $region13: #{tpu_custom_call.1} parent=11 // pred_check
          %p172 = pneg %p89
        $region14: #{tpu_custom_call.1} parent=11 // pred_check_branch
          %174 = sbr.rel (%p172) target = $region16
        $region15: #{tpu_custom_call.1} parent=11 // pred_region
          _
        $region16: #{tpu_custom_call.1} parent=11 // pred_fallthru
          _
      $region12: #{tpu_custom_call.1} parent=5 // pred_fallthru
        _
      %p175 = scmp.lt.s32.totalorder %s16, 4
      // Predicated region
      $region17: #{tpu_custom_call.1} parent=5 // pred_check
        %p176 = pneg %p175
      $region18: #{tpu_custom_call.1} parent=5 // pred_check_branch
        %178 = sbr.rel (%p176) target = $region20
      $region19: #{tpu_custom_call.1} parent=5 // pred_region
        // Predicated region
        $region21: #{tpu_custom_call.1} parent=19 // pred_check
          %p179 = pneg %p36
        $region22: #{tpu_custom_call.1} parent=19 // pred_check_branch
          %181 = sbr.rel (%p179) target = $region24
        $region23: #{tpu_custom_call.1} parent=19 // pred_region
          %s182 = smul.u32 16, %s16
          %p183 = scmp.lt.s32.totalorder %s182, 63
          %s184 = scalar_select %p183, %s182, 63
          %s185 = smul.addr %s184, 8
          %s186 = scalar_lea.vmem %s0, %s185
          %s187 = smul.u32 16, %s16
        $region24: #{tpu_custom_call.1} parent=19 // pred_fallthru
          _
        // Predicated region
        $region25: #{tpu_custom_call.1} parent=19 // pred_check
          %p188 = pneg %p62
        $region26: #{tpu_custom_call.1} parent=19 // pred_check_branch
          %190 = sbr.rel (%p188) target = $region28
        $region27: #{tpu_custom_call.1} parent=19 // pred_region
          %s191 = smul.u32 4, %s16
          %p192 = scmp.lt.s32.totalorder %s191, 15
          %s193 = scalar_select %p192, %s191, 15
          %s194 = smul.addr %s193, 8
          %s195 = scalar_lea.vmem %s1, %s194
          %s196 = smul.u32 4, %s16
        $region28: #{tpu_custom_call.1} parent=19 // pred_fallthru
          _
      $region20: #{tpu_custom_call.1} parent=5 // pred_fallthru
        _
      %p197 = scmp.le.s32.totalorder 1, %s16
      %p198 = scmp.lt.s32.totalorder %s16, 5
      %p199 = pnand %p197, %p198
      %p200 = pneg %p199
      // Predicated region
      $region29: #{tpu_custom_call.1} parent=5 // pred_check
        _
      $region30: #{tpu_custom_call.1} parent=5 // pred_check_branch
        %202 = sbr.rel (%p199) target = $region32
      $region31: #{tpu_custom_call.1} parent=5 // pred_region
        %s203 = ssub.s32 %s16, 1
        %s204 = smul.u32 16, %s21
        %p205 = scmp.lt.s32.totalorder %s204, 63
        %s206 = scalar_select %p205, %s204, 63
        %s207 = smul.addr %s206, 8
        %s208 = scalar_lea.vmem %s0, %s207
        %p209 = pneg %p42
        %p210 = pneg %p39
        %s211 = smul.u32 4, %s21
        %p212 = scmp.lt.s32.totalorder %s211, 15
        %s213 = scalar_select %p212, %s211, 15
        %s214 = smul.addr %s213, 8
        %s215 = scalar_lea.vmem %s1, %s214
        %p216 = pneg %p68
        %p217 = pneg %p65
        %p218 = pneg %p89
        %p219 = pneg %p86
        %p220 = pneg %p115
        %p221 = pneg %p112
        %s222 = sand.u32 %s102, 1
        %s223 = scalar_lea.sflag [#allocation3], %s222
        %s224 = sand.u32 %s102, 1
        %s225 = smul.addr %s224, 32
        %s226 = scalar_lea.vmem [#allocation2], %s225
        %p227 = pneg %p136
        %p228 = pneg %p133
        %p229 = pneg %p157
        %p230 = pneg %p154
        %s231 = smul.u32 16, %s21
        %p232 = scmp.lt.s32.totalorder %s231, 63
        %s233 = scalar_select %p232, %s231, 63
        %s234 = smul.addr %s233, 8
        %s235 = scalar_lea.vmem %s0, %s234
        %s236 = smul.u32 16, %s21
        %s237 = smul.u32 4, %s21
        %p238 = scmp.lt.s32.totalorder %s237, 15
        %s239 = scalar_select %p238, %s237, 15
        %s240 = smul.addr %s239, 8
        %s241 = scalar_lea.vmem %s1, %s240
        %s242 = smul.u32 4, %s21
        %s243 = smul.u32 4, %s21
        %p244 = scmp.eq.s32.totalorder %s21, 0
        // Predicated region
        $region33: #{tpu_custom_call.1} parent=31 // pred_check
          %p245 = pneg %p244
        $region34: #{tpu_custom_call.1} parent=31 // pred_check_branch
          %247 = sbr.rel (%p245) target = $region36
        $region35: #{tpu_custom_call.1} parent=31 // pred_region
          %vm248 = vcmask 122880
          %249 = vst.msk [vmem:[#allocation4] sm:$0x1] %vm248, 0.0
          %vm250 = vcmask 130048
          %251 = vst.msk [vmem:[#allocation6] sm:$0xff] %vm250, 0.0
          %252 = vst.msk [vmem:[#allocation6 + $0x8] sm:$0xff] %vm250, 0.0
        $region36: #{tpu_custom_call.1} parent=31 // pred_fallthru
          _
        %v253 = vld [vmem:[%s235] sm:$0xff]
        %v254 = vld [vmem:[%s235 + $0x8] sm:$0xff]
        %v255 = vld [vmem:[%s235 + $0x10] sm:$0xff]
        %v256 = vld [vmem:[%s235 + $0x18] sm:$0xff]
        %v257 = vld [vmem:[%s235 + $0x20] sm:$0xff]
        %v258 = vld [vmem:[%s235 + $0x28] sm:$0xff]
        %v259 = vld [vmem:[%s235 + $0x30] sm:$0xff]
        %v260 = vld [vmem:[%s235 + $0x38] sm:$0xff]
        %v261 = vld [vmem:[%s235 + $0x40] sm:$0xff]
        %v262 = vld [vmem:[%s235 + $0x48] sm:$0xff]
        %v263 = vld [vmem:[%s235 + $0x50] sm:$0xff]
        %v264 = vld [vmem:[%s235 + $0x58] sm:$0xff]
        %v265 = vld [vmem:[%s235 + $0x60] sm:$0xff]
        %v266 = vld [vmem:[%s235 + $0x68] sm:$0xff]
        %v267 = vld [vmem:[%s235 + $0x70] sm:$0xff]
        %v268 = vld [vmem:[%s235 + $0x78] sm:$0xff]
        %v269 = vld [vmem:[#allocation4] sm:$0x1]
        %vm270 = vcmask 130048
        %v271 = vsel %vm270, %v253, 0.0
        %v272 = vsel %vm270, %v254, 0.0
        %v273 = vadd.f32 %v271, %v272
        %v274 = vsel %vm270, %v255, 0.0
        %v275 = vadd.f32 %v273, %v274
        %v276 = vsel %vm270, %v256, 0.0
        %v277 = vadd.f32 %v275, %v276
        %v278 = vsel %vm270, %v257, 0.0
        %v279 = vadd.f32 %v277, %v278
        %v280 = vsel %vm270, %v258, 0.0
        %v281 = vadd.f32 %v279, %v280
        %v282 = vsel %vm270, %v259, 0.0
        %v283 = vadd.f32 %v281, %v282
        %v284 = vsel %vm270, %v260, 0.0
        %v285 = vadd.f32 %v283, %v284
        %v286 = vsel %vm270, %v261, 0.0
        %v287 = vadd.f32 %v285, %v286
        %v288 = vsel %vm270, %v262, 0.0
        %v289 = vadd.f32 %v287, %v288
        %v290 = vsel %vm270, %v263, 0.0
        %v291 = vadd.f32 %v289, %v290
        %v292 = vsel %vm270, %v264, 0.0
        %v293 = vadd.f32 %v291, %v292
        %v294 = vsel %vm270, %v265, 0.0
        %v295 = vadd.f32 %v293, %v294
        %v296 = vsel %vm270, %v266, 0.0
        %v297 = vadd.f32 %v295, %v296
        %v298 = vsel %vm270, %v267, 0.0
        %v299 = vadd.f32 %v297, %v298
        %v300 = vsel %vm270, %v268, 0.0
        %v301 = vadd.f32 %v299, %v300
        %v302 = vrot.slane %v301, 4
        %v303 = vadd.f32 %v301, %v302
        %v304 = vrot.slane %v303, 2
        %v305 = vadd.f32 %v303, %v304
        %v306 = vrot.slane %v305, 1
        %v307 = vadd.f32 %v305, %v306
        %v308 = vadd.f32 %v269, %v307
        %vm309 = vcmask 122880
        %310 = vst.msk [vmem:[#allocation4] sm:$0x1] %vm309, %v308
        %v311 = vld [vmem:[#allocation6] sm:$0xff]
        %v312 = vld [vmem:[#allocation6 + $0x8] sm:$0xff]
        %313 = vxpose.xlu0.b32.start [1/16] %v253, 128
        %314 = vxpose.xlu0.b32.cont [2/16] %v254, 128
        %315 = vxpose.xlu0.b32.cont [3/16] %v255, 128
        %316 = vxpose.xlu0.b32.cont [4/16] %v256, 128
        %317 = vxpose.xlu0.b32.cont [5/16] %v257, 128
        %318 = vxpose.xlu0.b32.cont [6/16] %v258, 128
        %319 = vxpose.xlu0.b32.cont [7/16] %v259, 128
        %320 = vxpose.xlu0.b32.cont [8/16] %v260, 128
        %321 = vxpose.xlu0.b32.cont [9/16] %v261, 128
        %322 = vxpose.xlu0.b32.cont [10/16] %v262, 128
        %323 = vxpose.xlu0.b32.cont [11/16] %v263, 128
        %324 = vxpose.xlu0.b32.cont [12/16] %v264, 128
        %325 = vxpose.xlu0.b32.cont [13/16] %v265, 128
        %326 = vxpose.xlu0.b32.cont [14/16] %v266, 128
        %327 = vxpose.xlu0.b32.cont [15/16] %v267, 128
        %328 = vxpose.xlu0.b32.end [16/16] %v268, 128
        %v329 = vpop.trf.xlu0
        %v330 = vpop.trf.xlu0
        %v331 = vpop.trf.xlu0
        %v332 = vpop.trf.xlu0
        %v333 = vpop.trf.xlu0
        %v334 = vpop.trf.xlu0
        %v335 = vpop.trf.xlu0
        %v336 = vpop.trf.xlu0
        %v337 = vpop.trf.xlu0
        %v338 = vpop.trf.xlu0
        %v339 = vpop.trf.xlu0
        %v340 = vpop.trf.xlu0
        %v341 = vpop.trf.xlu0
        %v342 = vpop.trf.xlu0
        %v343 = vpop.trf.xlu0
        %v344 = vpop.trf.xlu0
        %345 = vmatprep.subr.mxu0 0.0
        %346 = vmatpush1.msra.mxu0 %v253
        %347 = vmatprep.subr.mxu0 0.0
        %348 = vmatpush1.msra.mxu0 %v254
        %349 = vmatprep.subr.mxu0 0.0
        %350 = vmatpush1.msra.mxu0 %v255
        %351 = vmatprep.subr.mxu0 0.0
        %352 = vmatpush1.msra.mxu0 %v256
        %353 = vmatprep.subr.mxu0 0.0
        %354 = vmatpush1.msra.mxu0 %v257
        %355 = vmatprep.subr.mxu0 0.0
        %356 = vmatpush1.msra.mxu0 %v258
        %357 = vmatprep.subr.mxu0 0.0
        %358 = vmatpush1.msra.mxu0 %v259
        %359 = vmatprep.subr.mxu0 0.0
        %360 = vmatpush1.msra.mxu0 %v260
        %361 = vmatprep.subr.mxu0 0.0
        %362 = vmatpush1.msra.mxu0 %v261
        %363 = vmatprep.subr.mxu0 0.0
        %364 = vmatpush1.msra.mxu0 %v262
        %365 = vmatprep.subr.mxu0 0.0
        %366 = vmatpush1.msra.mxu0 %v263
        %367 = vmatprep.subr.mxu0 0.0
        %368 = vmatpush1.msra.mxu0 %v264
        %369 = vmatprep.subr.mxu0 0.0
        %370 = vmatpush1.msra.mxu0 %v265
        %371 = vmatprep.subr.mxu0 0.0
        %372 = vmatpush1.msra.mxu0 %v266
        %373 = vmatprep.subr.mxu0 0.0
        %374 = vmatpush1.msra.mxu0 %v267
        %375 = vmatprep.subr.mxu0 0.0
        %376 = vmatpush1.msra.mxu0 %v268
        %377 = vmatprep.subr.mxu0 0.0
        %378 = vmatpush1.msra.mxu0 0.0
        %379 = vmatprep.subr.mxu0 0.0
        %380 = vmatpush1.msra.mxu0 0.0
        %381 = vmatprep.subr.mxu0 0.0
        %382 = vmatpush1.msra.mxu0 0.0
        %383 = vmatprep.subr.mxu0 0.0
        %384 = vmatpush1.msra.mxu0 0.0
        %385 = vmatprep.subr.mxu0 0.0
        %386 = vmatpush1.msra.mxu0 0.0
        %387 = vmatprep.subr.mxu0 0.0
        %388 = vmatpush1.msra.mxu0 0.0
        %389 = vmatprep.subr.mxu0 0.0
        %390 = vmatpush1.msra.mxu0 0.0
        %391 = vmatprep.subr.mxu0 0.0
        %392 = vmatpush1.msra.mxu0 0.0
        %393 = vmatprep.subr.mxu0 0.0
        %394 = vmatpush1.msra.mxu0 0.0
        %395 = vmatprep.subr.mxu0 0.0
        %396 = vmatpush1.msra.mxu0 0.0
        %397 = vmatprep.subr.mxu0 0.0
        %398 = vmatpush1.msra.mxu0 0.0
        %399 = vmatprep.subr.mxu0 0.0
        %400 = vmatpush1.msra.mxu0 0.0
        %401 = vmatprep.subr.mxu0 0.0
        %402 = vmatpush1.msra.mxu0 0.0
        %403 = vmatprep.subr.mxu0 0.0
        %404 = vmatpush1.msra.mxu0 0.0
        %405 = vmatprep.subr.mxu0 0.0
        %406 = vmatpush1.msra.mxu0 0.0
        %407 = vmatprep.subr.mxu0 0.0
        %408 = vmatpush1.msra.mxu0 0.0
        %409 = vmatprep.mubr.f32.mxu0 0.0
        %410 = vmatmul.mubr.f32.gmra.mrb[0].mxu0 %v329
        %v411 = vpop.f32.mrb[0].mxu0
        %v412 = vadd.f32 0.0, %v411
        %v413 = vpop.f32.mrb[0].mxu0
        %414 = vmatprep.mubr.f32.mxu0 0.0
        %415 = vmatmul.mubr.f32.gmra.mrb[0].mxu0 %v330
        %v416 = vpop.f32.mrb[0].mxu0
        %v417 = vadd.f32 0.0, %v416
        %v418 = vpop.f32.mrb[0].mxu0
        %419 = vdwg.mxu0
        %v420 = vadd.f32 %v311, %v412
        %v421 = vadd.f32 %v312, %v417
        %422 = vst.msk [vmem:[#allocation6] sm:$0xff] %vm270, %v420
        %423 = vst.msk [vmem:[#allocation6 + $0x8] sm:$0xff] %vm270, %v421
        %v424 = vld [vmem:[%s241] sm:$0xff]
        %v425 = vld [vmem:[%s241 + $0x8] sm:$0xff]
        %v426 = vld [vmem:[%s241 + $0x10] sm:$0xff]
        %v427 = vld [vmem:[%s241 + $0x18] sm:$0xff]
        %v428 = vmul.f32 %v424, %v424
        %v429 = vmul.f32 %v425, %v425
        %v430 = vmul.f32 %v426, %v426
        %v431 = vmul.f32 %v427, %v427
        %v432 = vld [vmem:[%s2] sm:$0xff]
        %v433 = vld [vmem:[%s2 + $0x8] sm:$0xff]
        %v434 = vld [vmem:[%s2 + $0x10] sm:$0xff]
        %v435 = vld [vmem:[%s2 + $0x18] sm:$0xff]
        %v436 = vld [vmem:[%s2 + $0x20] sm:$0xff]
        %v437 = vld [vmem:[%s2 + $0x28] sm:$0xff]
        %v438 = vld [vmem:[%s2 + $0x30] sm:$0xff]
        %v439 = vld [vmem:[%s2 + $0x38] sm:$0xff]
        %v440 = vld [vmem:[%s2 + $0x40] sm:$0xff]
        %v441 = vld [vmem:[%s2 + $0x48] sm:$0xff]
        %v442 = vld [vmem:[%s2 + $0x50] sm:$0xff]
        %v443 = vld [vmem:[%s2 + $0x58] sm:$0xff]
        %v444 = vld [vmem:[%s2 + $0x60] sm:$0xff]
        %v445 = vld [vmem:[%s2 + $0x68] sm:$0xff]
        %v446 = vld [vmem:[%s2 + $0x70] sm:$0xff]
        %v447 = vld [vmem:[%s2 + $0x78] sm:$0xff]
        %448 = vmatprep.subr.mxu0 0.0
        %449 = vmatpush1.msra.mxu0 %v432
        %450 = vmatprep.subr.mxu0 0.0
        %451 = vmatpush1.msra.mxu0 %v433
        %452 = vmatprep.subr.mxu0 0.0
        %453 = vmatpush1.msra.mxu0 %v434
        %454 = vmatprep.subr.mxu0 0.0
        %455 = vmatpush1.msra.mxu0 %v435
        %456 = vmatprep.subr.mxu0 0.0
        %457 = vmatpush1.msra.mxu0 %v436
        %458 = vmatprep.subr.mxu0 0.0
        %459 = vmatpush1.msra.mxu0 %v437
        %460 = vmatprep.subr.mxu0 0.0
        %461 = vmatpush1.msra.mxu0 %v438
        %462 = vmatprep.subr.mxu0 0.0
        %463 = vmatpush1.msra.mxu0 %v439
        %464 = vmatprep.subr.mxu0 0.0
        %465 = vmatpush1.msra.mxu0 %v440
        %466 = vmatprep.subr.mxu0 0.0
        %467 = vmatpush1.msra.mxu0 %v441
        %468 = vmatprep.subr.mxu0 0.0
        %469 = vmatpush1.msra.mxu0 %v442
        %470 = vmatprep.subr.mxu0 0.0
        %471 = vmatpush1.msra.mxu0 %v443
        %472 = vmatprep.subr.mxu0 0.0
        %473 = vmatpush1.msra.mxu0 %v444
        %474 = vmatprep.subr.mxu0 0.0
        %475 = vmatpush1.msra.mxu0 %v445
        %476 = vmatprep.subr.mxu0 0.0
        %477 = vmatpush1.msra.mxu0 %v446
        %478 = vmatprep.subr.mxu0 0.0
        %479 = vmatpush1.msra.mxu0 %v447
        %480 = vmatprep.subr.mxu0 0.0
        %481 = vmatpush1.msra.mxu0 0.0
        %482 = vmatprep.subr.mxu0 0.0
        %483 = vmatpush1.msra.mxu0 0.0
        %484 = vmatprep.subr.mxu0 0.0
        %485 = vmatpush1.msra.mxu0 0.0
        %486 = vmatprep.subr.mxu0 0.0
        %487 = vmatpush1.msra.mxu0 0.0
        %488 = vmatprep.subr.mxu0 0.0
        %489 = vmatpush1.msra.mxu0 0.0
        %490 = vmatprep.subr.mxu0 0.0
        %491 = vmatpush1.msra.mxu0 0.0
        %492 = vmatprep.subr.mxu0 0.0
        %493 = vmatpush1.msra.mxu0 0.0
        %494 = vmatprep.subr.mxu0 0.0
        %495 = vmatpush1.msra.mxu0 0.0
        %496 = vmatprep.subr.mxu0 0.0
        %497 = vmatpush1.msra.mxu0 0.0
        %498 = vmatprep.subr.mxu0 0.0
        %499 = vmatpush1.msra.mxu0 0.0
        %500 = vmatprep.subr.mxu0 0.0
        %501 = vmatpush1.msra.mxu0 0.0
        %502 = vmatprep.subr.mxu0 0.0
        %503 = vmatpush1.msra.mxu0 0.0
        %504 = vmatprep.subr.mxu0 0.0
        %505 = vmatpush1.msra.mxu0 0.0
        %506 = vmatprep.subr.mxu0 0.0
        %507 = vmatpush1.msra.mxu0 0.0
        %508 = vmatprep.subr.mxu0 0.0
        %509 = vmatpush1.msra.mxu0 0.0
        %510 = vmatprep.subr.mxu0 0.0
        %511 = vmatpush1.msra.mxu0 0.0
        %512 = vmatprep.mubr.f32.mxu0 0.0
        %513 = vmatmul.mubr.f32.gmra.mrb[0].mxu0 %v428
        %v514 = vpop.f32.mrb[0].mxu0
        %v515 = vadd.f32 0.0, %v514
        %v516 = vpop.f32.mrb[0].mxu0
        %517 = vmatprep.mubr.f32.mxu0 0.0
        %518 = vmatmul.mubr.f32.gmra.mrb[0].mxu0 %v429
        %v519 = vpop.f32.mrb[0].mxu0
        %v520 = vadd.f32 0.0, %v519
        %v521 = vpop.f32.mrb[0].mxu0
        %522 = vmatprep.mubr.f32.mxu0 0.0
        %523 = vmatmul.mubr.f32.gmra.mrb[0].mxu0 %v430
        %v524 = vpop.f32.mrb[0].mxu0
        %v525 = vadd.f32 0.0, %v524
        %v526 = vpop.f32.mrb[0].mxu0
        %527 = vmatprep.mubr.f32.mxu0 0.0
        %528 = vmatmul.mubr.f32.gmra.mrb[0].mxu0 %v431
        %v529 = vpop.f32.mrb[0].mxu0
        %v530 = vadd.f32 0.0, %v529
        %v531 = vpop.f32.mrb[0].mxu0
        %532 = vdwg.mxu0
        %v533 = vmax.f32 %v515, 1e-24
        %v534 = vmax.f32 %v520, 1e-24
        %v535 = vmax.f32 %v525, 1e-24
        %v536 = vmax.f32 %v530, 1e-24
        %v537 = vrsqrt.pop %v533
        %v538 = vrsqrt.pop %v534
        %v539 = vrsqrt.pop %v535
        %v540 = vrsqrt.pop %v536
        %v541 = vmul.f32 %v424, %v537
        %v542 = vmul.f32 %v425, %v538
        %v543 = vmul.f32 %v426, %v539
        %v544 = vmul.f32 %v427, %v540
        %545 = vst [vmem:[%s226] sm:$0xff] %v541
        %546 = vst [vmem:[%s226 + $0x8] sm:$0xff] %v542
        %547 = vst [vmem:[%s226 + $0x10] sm:$0xff] %v543
        %548 = vst [vmem:[%s226 + $0x18] sm:$0xff] %v544
        %s549 = sand.u32 %s102, 1
        %s550 = scalar_lea.sflag [#allocation3], %s549
        %s551 = sand.u32 %s102, 1
        %s552 = smul.addr %s551, 32
        %s553 = scalar_lea.vmem [#allocation2], %s552
        // Predicated region
        $region37: #{tpu_custom_call.1} parent=31 // pred_check
          %p554 = pneg %p112
        $region38: #{tpu_custom_call.1} parent=31 // pred_check_branch
          %556 = sbr.rel (%p554) target = $region40
        $region39: #{tpu_custom_call.1} parent=31 // pred_region
          %s557 = smul.u32 4, %s21
          %s559 = ssub.s32 512, 512
          %560 = vsyncadd %s550, %s559
          %s561 = smul.addr %s557, 128
          %s562 = scalar_lea.hbm %s3, %s561
          %s563 = sshll.u32 %s553, 4
          %s564 = int_to_ptr.vmem [resolvable:$true] %s563
          %569 = dma.vmem_to_hbm [thread:$0]  %s564, 512, %s562, %s550, 128, 128, 8
        $region40: #{tpu_custom_call.1} parent=31 // pred_fallthru
          _
        // Predicated region
        $region41: #{tpu_custom_call.1} parent=31 // pred_check
          %p570 = pneg %p133
        $region42: #{tpu_custom_call.1} parent=31 // pred_check_branch
          %572 = sbr.rel (%p570) target = $region44
        $region43: #{tpu_custom_call.1} parent=31 // pred_region
          %s574 = ssub.s32 16, 16
          %575 = vsyncadd [#allocation5], %s574
          %s577 = sshll.u32 [#allocation4], 4
          %s578 = int_to_ptr.vmem [resolvable:$true] %s577
          %580 = dma.vmem_to_hbm [thread:$0]  %s578, 16, %s4, [#allocation5]
        $region44: #{tpu_custom_call.1} parent=31 // pred_fallthru
          _
        // Predicated region
        $region45: #{tpu_custom_call.1} parent=31 // pred_check
          %p581 = pneg %p154
        $region46: #{tpu_custom_call.1} parent=31 // pred_check_branch
          %583 = sbr.rel (%p581) target = $region48
        $region47: #{tpu_custom_call.1} parent=31 // pred_region
          %s585 = ssub.s32 256, 256
          %586 = vsyncadd [#allocation5], %s585
          %s587 = sshll.u32 [#allocation6], 4
          %s588 = int_to_ptr.vmem [resolvable:$true] %s587
          %593 = dma.vmem_to_hbm [thread:$0]  %s588, 256, %s5, [#allocation5], 128, 128, 8
        $region48: #{tpu_custom_call.1} parent=31 // pred_fallthru
          _
        // Predicated region
        $region49: #{tpu_custom_call.1} parent=31 // pred_check
          %p594 = pneg %p133
        $region50: #{tpu_custom_call.1} parent=31 // pred_check_branch
          %596 = sbr.rel (%p594) target = $region52
        $region51: #{tpu_custom_call.1} parent=31 // pred_region
          %597 = dma.done [#allocation5], 16
        $region52: #{tpu_custom_call.1} parent=31 // pred_fallthru
          _
        // Predicated region
        $region53: #{tpu_custom_call.1} parent=31 // pred_check
          %p598 = pneg %p154
        $region54: #{tpu_custom_call.1} parent=31 // pred_check_branch
          %600 = sbr.rel (%p598) target = $region56
        $region55: #{tpu_custom_call.1} parent=31 // pred_region
          %601 = dma.done [#allocation5], 256
        $region56: #{tpu_custom_call.1} parent=31 // pred_fallthru
          _
      $region32: #{tpu_custom_call.1} parent=5 // pred_fallthru
        _
      %p602 = scmp.le.s32.totalorder 2, %s16
      // Predicated region
      $region57: #{tpu_custom_call.1} parent=5 // pred_check
        %p603 = pneg %p602
      $region58: #{tpu_custom_call.1} parent=5 // pred_check_branch
        %605 = sbr.rel (%p603) target = $region60
      $region59: #{tpu_custom_call.1} parent=5 // pred_region
        %s606 = ssub.s32 %s16, 2
        // Predicated region
        $region61: #{tpu_custom_call.1} parent=59 // pred_check
          %p607 = pneg %p118
        $region62: #{tpu_custom_call.1} parent=59 // pred_check_branch
          %609 = sbr.rel (%p607) target = $region64
        $region63: #{tpu_custom_call.1} parent=59 // pred_region
          %s610 = sand.u32 %s103, 1
          %s611 = scalar_lea.sflag [#allocation3], %s610
          %s612 = sand.u32 %s103, 1
          %s613 = smul.addr %s612, 32
          %s614 = scalar_lea.vmem [#allocation2], %s613
          %615 = dma.done %s611, 512
        $region64: #{tpu_custom_call.1} parent=59 // pred_fallthru
          _
      $region60: #{tpu_custom_call.1} parent=5 // pred_fallthru
        _
    $region6: #{tpu_custom_call.1} parent=1 // loop_footer
      %s20 = sadd.s32 1, %s16
    $region7: #{tpu_custom_call.1} parent=1 // loop_footer_branch
      %15 = sbr.rel target = $region3
    $region8: #{tpu_custom_call.1} parent=1 // loop_exit
      _
    %616 = vsyncpa [#allocation3], 1
    %s617 = scalar_lea.sflag [#allocation3], 1
    %618 = vsyncpa %s617, 1
    %619 = vsyncpa [#allocation5], 1

</llo_original>
